<compile_context>
chip_gen: v6e
topology: v6e:2x2x1
jax: 0.10.0
libtpu: 0.0.40
codegen_flags: <defaults>
</compile_context>

<pallas_src>
import jax
import jax.numpy as jnp
from jax.experimental import pallas as pl
from jax.experimental.pallas import tpu as pltpu


def lstm_kernel(x_ref, wih_ref, whh_ref, b_ref, wlin_ref, blin_ref, out_ref):
    """Single-layer LSTM over the full sequence + final linear projection.

    x_ref:    (T, B, I)   time-major input
    wih_ref:  (I, 4H)     input->gates weights (g-gate columns pre-scaled by 2)
    whh_ref:  (H, 4H)     hidden->gates weights (g-gate columns pre-scaled by 2)
    b_ref:    (1, 4H)     combined bias b_ih + b_hh (g-gate block pre-scaled by 2)
    wlin_ref: (H, O)      final linear weight (transposed vs PyTorch)
    blin_ref: (1, O)      final linear bias
    out_ref:  (B, O)      predictions for the last timestep
    """
    T, B, I = x_ref.shape
    H = whh_ref.shape[0]

    # ---- Hoisted input projection + bias (off the recurrent critical path) ---
    x2d = x_ref[...].reshape(T * B, I)                               # (T*B, I)
    gates_x = (
        jnp.dot(x2d, wih_ref[...], preferred_element_type=jnp.float32)
        + b_ref[...]
    ).reshape(T, B, 4 * H)                                           # (T, B, 4H)

    whh = whh_ref[...]                                               # (H, 4H)

    h = jnp.zeros((B, H), jnp.float32)
    c = jnp.zeros((B, H), jnp.float32)

    # ---- Recurrence: statically unrolled, one matmul + one sigmoid per step --
    for t in range(T):
        gates = gates_x[t] + jnp.dot(h, whh, preferred_element_type=jnp.float32)
        s = jax.nn.sigmoid(gates)            # single full-vreg EUP pass (B,4H)
        # PyTorch gate ordering: input, forget, cell(g), output
        i_g = s[:, 0 * H:1 * H]
        f_g = s[:, 1 * H:2 * H]
        g_g = 2.0 * s[:, 2 * H:3 * H] - 1.0  # == tanh(pre-scale-by-2 g preact)
        o_g = s[:, 3 * H:4 * H]
        c = f_g * c + i_g * g_g
        h = o_g * jnp.tanh(c)

    # ---- Final linear projection on the last hidden state ----
    # O=1 -> masked (lane-sparse) store; accepted: total output is B floats.
    out_ref[...] = (
        jnp.dot(h, wlin_ref[...], preferred_element_type=jnp.float32)
        + blin_ref[...]
    )


def model_lstm_forward(x, params):
    """x: (B, T, I) float32 (batch_first, like the PyTorch module).
    Returns predictions of shape (B * output_size,), matching .view(-1)."""
    w_ih, w_hh, b_ih, b_hh, w_lin, b_lin = params
    B, T, I = x.shape
    H = w_hh.shape[1]            # w_hh is (4H, H) in PyTorch layout
    O = w_lin.shape[0]

    x_tm = jnp.transpose(x, (1, 0, 2)).astype(jnp.float32)        # (T, B, I)
    wih_t = jnp.transpose(w_ih).astype(jnp.float32)               # (I, 4H)
    whh_t = jnp.transpose(w_hh).astype(jnp.float32)               # (H, 4H)
    b = (b_ih + b_hh).reshape(1, 4 * H).astype(jnp.float32)       # (1, 4H)

    # Pre-scale the g-gate (cell) block by 2 so the kernel can use a single
    # full-width sigmoid and recover tanh via 2*sigmoid(2z) - 1 (exact algebra).
    gscale = jnp.concatenate([
        jnp.ones((2 * H,), jnp.float32),
        jnp.full((H,), 2.0, jnp.float32),
        jnp.ones((H,), jnp.float32),
    ])
    wih_t = wih_t * gscale[None, :]
    whh_t = whh_t * gscale[None, :]
    b = b * gscale[None, :]

    wlin_t = jnp.transpose(w_lin).astype(jnp.float32)             # (H, O)
    blin = b_lin.reshape(1, O).astype(jnp.float32)                # (1, O)

    out = pl.pallas_call(
        lstm_kernel,
        out_shape=jax.ShapeDtypeStruct((B, O), jnp.float32),
        in_specs=[pl.BlockSpec(memory_space=pltpu.MemorySpace.VMEM)] * 6,
        out_specs=pl.BlockSpec(memory_space=pltpu.MemorySpace.VMEM),
        compiler_params=pltpu.CompilerParams(
            vmem_limit_bytes=16 * 1024 * 1024,  # far above actual footprint
        ),
    )(x_tm, wih_t, whh_t, b, wlin_t, blin)

    return out.reshape(-1)


def init_params(key, input_size, hidden_size, output_size):
    """Deterministic init mimicking PyTorch's uniform(-1/sqrt(H), 1/sqrt(H))."""
    k = 1.0 / jnp.sqrt(jnp.float32(hidden_size))
    keys = jax.random.split(key, 6)
    w_ih = jax.random.uniform(keys[0], (4 * hidden_size, input_size), jnp.float32, -k, k)
    w_hh = jax.random.uniform(keys[1], (4 * hidden_size, hidden_size), jnp.float32, -k, k)
    b_ih = jax.random.uniform(keys[2], (4 * hidden_size,), jnp.float32, -k, k)
    b_hh = jax.random.uniform(keys[3], (4 * hidden_size,), jnp.float32, -k, k)
    w_lin = jax.random.uniform(keys[4], (output_size, hidden_size), jnp.float32, -k, k)
    b_lin = jax.random.uniform(keys[5], (output_size,), jnp.float32, -k, k)
    return (w_ih, w_hh, b_ih, b_hh, w_lin, b_lin)


def reference_forward(x, params):
    """Pure-JAX reference of the PyTorch forward (for sanity check)."""
    w_ih, w_hh, b_ih, b_hh, w_lin, b_lin = params
    B, T, I = x.shape
    H = w_hh.shape[1]
    h = jnp.zeros((B, H), jnp.float32)
    c = jnp.zeros((B, H), jnp.float32)
    for t in range(T):
        g = x[:, t, :] @ w_ih.T + b_ih + h @ w_hh.T + b_hh
        i_g = jax.nn.sigmoid(g[:, 0 * H:1 * H])
        f_g = jax.nn.sigmoid(g[:, 1 * H:2 * H])
        g_g = jnp.tanh(g[:, 2 * H:3 * H])
        o_g = jax.nn.sigmoid(g[:, 3 * H:4 * H])
        c = f_g * c + i_g * g_g
        h = o_g * jnp.tanh(c)
    return (h @ w_lin.T + b_lin).reshape(-1)


if __name__ == "__main__":
    B, T, I, H, O = 8, 8, 4, 32, 1

    key = jax.random.PRNGKey(0)
    k_x, k_p = jax.random.split(key)
    x = jax.random.normal(k_x, (B, T, I), dtype=jnp.float32)
    params = init_params(k_p, I, H, O)

    preds = jax.block_until_ready(model_lstm_forward(x, params))
    ref = reference_forward(x, params)

    assert preds.shape == (B * O,)
    # Slightly relaxed tolerance: the single-sigmoid (2*sigmoid(2z)-1 == tanh z)
    # trick is exact algebraically but rounds differently than a direct tanh.
    assert jnp.allclose(preds, ref, atol=1e-4, rtol=1e-4)
    print("KERNEL_OK")
</pallas_src>

<mosaic_0001>
module attributes {stable_mosaic.version = 11 : i64} {
  func.func @lstm_kernel(%arg0: memref<8x8x4xf32, #tpu.memory_space<vmem>>, %arg1: memref<4x128xf32, #tpu.memory_space<vmem>>, %arg2: memref<32x128xf32, #tpu.memory_space<vmem>>, %arg3: memref<1x128xf32, #tpu.memory_space<vmem>>, %arg4: memref<32x1xf32, #tpu.memory_space<vmem>>, %arg5: memref<1x1xf32, #tpu.memory_space<vmem>>, %arg6: memref<8x1xf32, #tpu.memory_space<vmem>>) attributes {dimension_semantics = [], scalar_prefetch = 0 : i64, scratch_operands = 0 : i64, tpu.core_type = #tpu.core_type<tc>} {
    %c0 = arith.constant 0 : index
    %c0_0 = arith.constant 0 : index
    %c0_1 = arith.constant 0 : index
    %0 = vector.load %arg0[%c0, %c0_0, %c0_1] : memref<8x8x4xf32, #tpu.memory_space<vmem>>, vector<8x8x4xf32>
    %1 = vector.shape_cast %0 : vector<8x8x4xf32> to vector<64x4xf32>
    %c0_2 = arith.constant 0 : index
    %c0_3 = arith.constant 0 : index
    %2 = vector.load %arg1[%c0_2, %c0_3] : memref<4x128xf32, #tpu.memory_space<vmem>>, vector<4x128xf32>
    %cst = arith.constant dense<0.000000e+00> : vector<64x128xf32>
    %3 = tpu.matmul %1, %2, %cst {dimension_numbers = #tpu.dot_dimension_numbers<[1], [0], [0], [1], [0, 0, 1, 1], [], []>} : vector<64x4xf32>, vector<4x128xf32>, vector<64x128xf32> -> vector<64x128xf32>
    %c0_4 = arith.constant 0 : index
    %c0_5 = arith.constant 0 : index
    %4 = vector.load %arg3[%c0_4, %c0_5] : memref<1x128xf32, #tpu.memory_space<vmem>>, vector<1x128xf32>
    %5 = vector.broadcast %4 : vector<1x128xf32> to vector<64x128xf32>
    %6 = arith.addf %3, %5 : vector<64x128xf32>
    %7 = vector.shape_cast %6 : vector<64x128xf32> to vector<8x8x128xf32>
    %c0_6 = arith.constant 0 : index
    %c0_7 = arith.constant 0 : index
    %8 = vector.load %arg2[%c0_6, %c0_7] : memref<32x128xf32, #tpu.memory_space<vmem>>, vector<32x128xf32>
    %cst_8 = arith.constant 0.000000e+00 : f32
    %9 = vector.broadcast %cst_8 : f32 to vector<8x32xf32>
    %cst_9 = arith.constant 0.000000e+00 : f32
    %10 = vector.broadcast %cst_9 : f32 to vector<8x32xf32>
    %11 = vector.extract_strided_slice %7 {offsets = [0, 0, 0], sizes = [1, 8, 128], strides = [1, 1, 1]} : vector<8x8x128xf32> to vector<1x8x128xf32>
    %12 = vector.shape_cast %11 : vector<1x8x128xf32> to vector<8x128xf32>
    %cst_10 = arith.constant dense<0.000000e+00> : vector<8x128xf32>
    %13 = tpu.matmul %9, %8, %cst_10 {dimension_numbers = #tpu.dot_dimension_numbers<[1], [0], [0], [1], [0, 0, 1, 1], [], []>} : vector<8x32xf32>, vector<32x128xf32>, vector<8x128xf32> -> vector<8x128xf32>
    %14 = arith.addf %12, %13 : vector<8x128xf32>
    %15 = arith.negf %14 : vector<8x128xf32>
    %16 = math.exp %15 : vector<8x128xf32>
    %cst_11 = arith.constant 1.000000e+00 : f32
    %17 = vector.broadcast %cst_11 : f32 to vector<8x128xf32>
    %18 = arith.addf %17, %16 : vector<8x128xf32>
    %19 = arith.divf %17, %18 : vector<8x128xf32>
    %20 = vector.extract_strided_slice %19 {offsets = [0, 0], sizes = [8, 32], strides = [1, 1]} : vector<8x128xf32> to vector<8x32xf32>
    %21 = vector.extract_strided_slice %19 {offsets = [0, 32], sizes = [8, 32], strides = [1, 1]} : vector<8x128xf32> to vector<8x32xf32>
    %22 = vector.extract_strided_slice %19 {offsets = [0, 64], sizes = [8, 32], strides = [1, 1]} : vector<8x128xf32> to vector<8x32xf32>
    %cst_12 = arith.constant 2.000000e+00 : f32
    %23 = vector.broadcast %cst_12 : f32 to vector<8x32xf32>
    %24 = arith.mulf %23, %22 : vector<8x32xf32>
    %cst_13 = arith.constant 1.000000e+00 : f32
    %25 = vector.broadcast %cst_13 : f32 to vector<8x32xf32>
    %26 = arith.subf %24, %25 : vector<8x32xf32>
    %27 = vector.extract_strided_slice %19 {offsets = [0, 96], sizes = [8, 32], strides = [1, 1]} : vector<8x128xf32> to vector<8x32xf32>
    %28 = arith.mulf %21, %10 : vector<8x32xf32>
    %29 = arith.mulf %20, %26 : vector<8x32xf32>
    %30 = arith.addf %28, %29 : vector<8x32xf32>
    %31 = math.tanh %30 : vector<8x32xf32>
    %32 = arith.mulf %27, %31 : vector<8x32xf32>
    %33 = vector.extract_strided_slice %7 {offsets = [1, 0, 0], sizes = [1, 8, 128], strides = [1, 1, 1]} : vector<8x8x128xf32> to vector<1x8x128xf32>
    %34 = vector.shape_cast %33 : vector<1x8x128xf32> to vector<8x128xf32>
    %cst_14 = arith.constant dense<0.000000e+00> : vector<8x128xf32>
    %35 = tpu.matmul %32, %8, %cst_14 {dimension_numbers = #tpu.dot_dimension_numbers<[1], [0], [0], [1], [0, 0, 1, 1], [], []>} : vector<8x32xf32>, vector<32x128xf32>, vector<8x128xf32> -> vector<8x128xf32>
    %36 = arith.addf %34, %35 : vector<8x128xf32>
    %37 = arith.negf %36 : vector<8x128xf32>
    %38 = math.exp %37 : vector<8x128xf32>
    %cst_15 = arith.constant 1.000000e+00 : f32
    %39 = vector.broadcast %cst_15 : f32 to vector<8x128xf32>
    %40 = arith.addf %39, %38 : vector<8x128xf32>
    %41 = arith.divf %39, %40 : vector<8x128xf32>
    %42 = vector.extract_strided_slice %41 {offsets = [0, 0], sizes = [8, 32], strides = [1, 1]} : vector<8x128xf32> to vector<8x32xf32>
    %43 = vector.extract_strided_slice %41 {offsets = [0, 32], sizes = [8, 32], strides = [1, 1]} : vector<8x128xf32> to vector<8x32xf32>
    %44 = vector.extract_strided_slice %41 {offsets = [0, 64], sizes = [8, 32], strides = [1, 1]} : vector<8x128xf32> to vector<8x32xf32>
    %cst_16 = arith.constant 2.000000e+00 : f32
    %45 = vector.broadcast %cst_16 : f32 to vector<8x32xf32>
    %46 = arith.mulf %45, %44 : vector<8x32xf32>
    %cst_17 = arith.constant 1.000000e+00 : f32
    %47 = vector.broadcast %cst_17 : f32 to vector<8x32xf32>
    %48 = arith.subf %46, %47 : vector<8x32xf32>
    %49 = vector.extract_strided_slice %41 {offsets = [0, 96], sizes = [8, 32], strides = [1, 1]} : vector<8x128xf32> to vector<8x32xf32>
    %50 = arith.mulf %43, %30 : vector<8x32xf32>
    %51 = arith.mulf %42, %48 : vector<8x32xf32>
    %52 = arith.addf %50, %51 : vector<8x32xf32>
    %53 = math.tanh %52 : vector<8x32xf32>
    %54 = arith.mulf %49, %53 : vector<8x32xf32>
    %55 = vector.extract_strided_slice %7 {offsets = [2, 0, 0], sizes = [1, 8, 128], strides = [1, 1, 1]} : vector<8x8x128xf32> to vector<1x8x128xf32>
    %56 = vector.shape_cast %55 : vector<1x8x128xf32> to vector<8x128xf32>
    %cst_18 = arith.constant dense<0.000000e+00> : vector<8x128xf32>
    %57 = tpu.matmul %54, %8, %cst_18 {dimension_numbers = #tpu.dot_dimension_numbers<[1], [0], [0], [1], [0, 0, 1, 1], [], []>} : vector<8x32xf32>, vector<32x128xf32>, vector<8x128xf32> -> vector<8x128xf32>
    %58 = arith.addf %56, %57 : vector<8x128xf32>
    %59 = arith.negf %58 : vector<8x128xf32>
    %60 = math.exp %59 : vector<8x128xf32>
    %cst_19 = arith.constant 1.000000e+00 : f32
    %61 = vector.broadcast %cst_19 : f32 to vector<8x128xf32>
    %62 = arith.addf %61, %60 : vector<8x128xf32>
    %63 = arith.divf %61, %62 : vector<8x128xf32>
    %64 = vector.extract_strided_slice %63 {offsets = [0, 0], sizes = [8, 32], strides = [1, 1]} : vector<8x128xf32> to vector<8x32xf32>
    %65 = vector.extract_strided_slice %63 {offsets = [0, 32], sizes = [8, 32], strides = [1, 1]} : vector<8x128xf32> to vector<8x32xf32>
    %66 = vector.extract_strided_slice %63 {offsets = [0, 64], sizes = [8, 32], strides = [1, 1]} : vector<8x128xf32> to vector<8x32xf32>
    %cst_20 = arith.constant 2.000000e+00 : f32
    %67 = vector.broadcast %cst_20 : f32 to vector<8x32xf32>
    %68 = arith.mulf %67, %66 : vector<8x32xf32>
    %cst_21 = arith.constant 1.000000e+00 : f32
    %69 = vector.broadcast %cst_21 : f32 to vector<8x32xf32>
    %70 = arith.subf %68, %69 : vector<8x32xf32>
    %71 = vector.extract_strided_slice %63 {offsets = [0, 96], sizes = [8, 32], strides = [1, 1]} : vector<8x128xf32> to vector<8x32xf32>
    %72 = arith.mulf %65, %52 : vector<8x32xf32>
    %73 = arith.mulf %64, %70 : vector<8x32xf32>
    %74 = arith.addf %72, %73 : vector<8x32xf32>
    %75 = math.tanh %74 : vector<8x32xf32>
    %76 = arith.mulf %71, %75 : vector<8x32xf32>
    %77 = vector.extract_strided_slice %7 {offsets = [3, 0, 0], sizes = [1, 8, 128], strides = [1, 1, 1]} : vector<8x8x128xf32> to vector<1x8x128xf32>
    %78 = vector.shape_cast %77 : vector<1x8x128xf32> to vector<8x128xf32>
    %cst_22 = arith.constant dense<0.000000e+00> : vector<8x128xf32>
    %79 = tpu.matmul %76, %8, %cst_22 {dimension_numbers = #tpu.dot_dimension_numbers<[1], [0], [0], [1], [0, 0, 1, 1], [], []>} : vector<8x32xf32>, vector<32x128xf32>, vector<8x128xf32> -> vector<8x128xf32>
    %80 = arith.addf %78, %79 : vector<8x128xf32>
    %81 = arith.negf %80 : vector<8x128xf32>
    %82 = math.exp %81 : vector<8x128xf32>
    %cst_23 = arith.constant 1.000000e+00 : f32
    %83 = vector.broadcast %cst_23 : f32 to vector<8x128xf32>
    %84 = arith.addf %83, %82 : vector<8x128xf32>
    %85 = arith.divf %83, %84 : vector<8x128xf32>
    %86 = vector.extract_strided_slice %85 {offsets = [0, 0], sizes = [8, 32], strides = [1, 1]} : vector<8x128xf32> to vector<8x32xf32>
    %87 = vector.extract_strided_slice %85 {offsets = [0, 32], sizes = [8, 32], strides = [1, 1]} : vector<8x128xf32> to vector<8x32xf32>
    %88 = vector.extract_strided_slice %85 {offsets = [0, 64], sizes = [8, 32], strides = [1, 1]} : vector<8x128xf32> to vector<8x32xf32>
    %cst_24 = arith.constant 2.000000e+00 : f32
    %89 = vector.broadcast %cst_24 : f32 to vector<8x32xf32>
    %90 = arith.mulf %89, %88 : vector<8x32xf32>
    %cst_25 = arith.constant 1.000000e+00 : f32
    %91 = vector.broadcast %cst_25 : f32 to vector<8x32xf32>
    %92 = arith.subf %90, %91 : vector<8x32xf32>
    %93 = vector.extract_strided_slice %85 {offsets = [0, 96], sizes = [8, 32], strides = [1, 1]} : vector<8x128xf32> to vector<8x32xf32>
    %94 = arith.mulf %87, %74 : vector<8x32xf32>
    %95 = arith.mulf %86, %92 : vector<8x32xf32>
    %96 = arith.addf %94, %95 : vector<8x32xf32>
    %97 = math.tanh %96 : vector<8x32xf32>
    %98 = arith.mulf %93, %97 : vector<8x32xf32>
    %99 = vector.extract_strided_slice %7 {offsets = [4, 0, 0], sizes = [1, 8, 128], strides = [1, 1, 1]} : vector<8x8x128xf32> to vector<1x8x128xf32>
    %100 = vector.shape_cast %99 : vector<1x8x128xf32> to vector<8x128xf32>
    %cst_26 = arith.constant dense<0.000000e+00> : vector<8x128xf32>
    %101 = tpu.matmul %98, %8, %cst_26 {dimension_numbers = #tpu.dot_dimension_numbers<[1], [0], [0], [1], [0, 0, 1, 1], [], []>} : vector<8x32xf32>, vector<32x128xf32>, vector<8x128xf32> -> vector<8x128xf32>
    %102 = arith.addf %100, %101 : vector<8x128xf32>
    %103 = arith.negf %102 : vector<8x128xf32>
    %104 = math.exp %103 : vector<8x128xf32>
    %cst_27 = arith.constant 1.000000e+00 : f32
    %105 = vector.broadcast %cst_27 : f32 to vector<8x128xf32>
    %106 = arith.addf %105, %104 : vector<8x128xf32>
    %107 = arith.divf %105, %106 : vector<8x128xf32>
    %108 = vector.extract_strided_slice %107 {offsets = [0, 0], sizes = [8, 32], strides = [1, 1]} : vector<8x128xf32> to vector<8x32xf32>
    %109 = vector.extract_strided_slice %107 {offsets = [0, 32], sizes = [8, 32], strides = [1, 1]} : vector<8x128xf32> to vector<8x32xf32>
    %110 = vector.extract_strided_slice %107 {offsets = [0, 64], sizes = [8, 32], strides = [1, 1]} : vector<8x128xf32> to vector<8x32xf32>
    %cst_28 = arith.constant 2.000000e+00 : f32
    %111 = vector.broadcast %cst_28 : f32 to vector<8x32xf32>
    %112 = arith.mulf %111, %110 : vector<8x32xf32>
    %cst_29 = arith.constant 1.000000e+00 : f32
    %113 = vector.broadcast %cst_29 : f32 to vector<8x32xf32>
    %114 = arith.subf %112, %113 : vector<8x32xf32>
    %115 = vector.extract_strided_slice %107 {offsets = [0, 96], sizes = [8, 32], strides = [1, 1]} : vector<8x128xf32> to vector<8x32xf32>
    %116 = arith.mulf %109, %96 : vector<8x32xf32>
    %117 = arith.mulf %108, %114 : vector<8x32xf32>
    %118 = arith.addf %116, %117 : vector<8x32xf32>
    %119 = math.tanh %118 : vector<8x32xf32>
    %120 = arith.mulf %115, %119 : vector<8x32xf32>
    %121 = vector.extract_strided_slice %7 {offsets = [5, 0, 0], sizes = [1, 8, 128], strides = [1, 1, 1]} : vector<8x8x128xf32> to vector<1x8x128xf32>
    %122 = vector.shape_cast %121 : vector<1x8x128xf32> to vector<8x128xf32>
    %cst_30 = arith.constant dense<0.000000e+00> : vector<8x128xf32>
    %123 = tpu.matmul %120, %8, %cst_30 {dimension_numbers = #tpu.dot_dimension_numbers<[1], [0], [0], [1], [0, 0, 1, 1], [], []>} : vector<8x32xf32>, vector<32x128xf32>, vector<8x128xf32> -> vector<8x128xf32>
    %124 = arith.addf %122, %123 : vector<8x128xf32>
    %125 = arith.negf %124 : vector<8x128xf32>
    %126 = math.exp %125 : vector<8x128xf32>
    %cst_31 = arith.constant 1.000000e+00 : f32
    %127 = vector.broadcast %cst_31 : f32 to vector<8x128xf32>
    %128 = arith.addf %127, %126 : vector<8x128xf32>
    %129 = arith.divf %127, %128 : vector<8x128xf32>
    %130 = vector.extract_strided_slice %129 {offsets = [0, 0], sizes = [8, 32], strides = [1, 1]} : vector<8x128xf32> to vector<8x32xf32>
    %131 = vector.extract_strided_slice %129 {offsets = [0, 32], sizes = [8, 32], strides = [1, 1]} : vector<8x128xf32> to vector<8x32xf32>
    %132 = vector.extract_strided_slice %129 {offsets = [0, 64], sizes = [8, 32], strides = [1, 1]} : vector<8x128xf32> to vector<8x32xf32>
    %cst_32 = arith.constant 2.000000e+00 : f32
    %133 = vector.broadcast %cst_32 : f32 to vector<8x32xf32>
    %134 = arith.mulf %133, %132 : vector<8x32xf32>
    %cst_33 = arith.constant 1.000000e+00 : f32
    %135 = vector.broadcast %cst_33 : f32 to vector<8x32xf32>
    %136 = arith.subf %134, %135 : vector<8x32xf32>
    %137 = vector.extract_strided_slice %129 {offsets = [0, 96], sizes = [8, 32], strides = [1, 1]} : vector<8x128xf32> to vector<8x32xf32>
    %138 = arith.mulf %131, %118 : vector<8x32xf32>
    %139 = arith.mulf %130, %136 : vector<8x32xf32>
    %140 = arith.addf %138, %139 : vector<8x32xf32>
    %141 = math.tanh %140 : vector<8x32xf32>
    %142 = arith.mulf %137, %141 : vector<8x32xf32>
    %143 = vector.extract_strided_slice %7 {offsets = [6, 0, 0], sizes = [1, 8, 128], strides = [1, 1, 1]} : vector<8x8x128xf32> to vector<1x8x128xf32>
    %144 = vector.shape_cast %143 : vector<1x8x128xf32> to vector<8x128xf32>
    %cst_34 = arith.constant dense<0.000000e+00> : vector<8x128xf32>
    %145 = tpu.matmul %142, %8, %cst_34 {dimension_numbers = #tpu.dot_dimension_numbers<[1], [0], [0], [1], [0, 0, 1, 1], [], []>} : vector<8x32xf32>, vector<32x128xf32>, vector<8x128xf32> -> vector<8x128xf32>
    %146 = arith.addf %144, %145 : vector<8x128xf32>
    %147 = arith.negf %146 : vector<8x128xf32>
    %148 = math.exp %147 : vector<8x128xf32>
    %cst_35 = arith.constant 1.000000e+00 : f32
    %149 = vector.broadcast %cst_35 : f32 to vector<8x128xf32>
    %150 = arith.addf %149, %148 : vector<8x128xf32>
    %151 = arith.divf %149, %150 : vector<8x128xf32>
    %152 = vector.extract_strided_slice %151 {offsets = [0, 0], sizes = [8, 32], strides = [1, 1]} : vector<8x128xf32> to vector<8x32xf32>
    %153 = vector.extract_strided_slice %151 {offsets = [0, 32], sizes = [8, 32], strides = [1, 1]} : vector<8x128xf32> to vector<8x32xf32>
    %154 = vector.extract_strided_slice %151 {offsets = [0, 64], sizes = [8, 32], strides = [1, 1]} : vector<8x128xf32> to vector<8x32xf32>
    %cst_36 = arith.constant 2.000000e+00 : f32
    %155 = vector.broadcast %cst_36 : f32 to vector<8x32xf32>
    %156 = arith.mulf %155, %154 : vector<8x32xf32>
    %cst_37 = arith.constant 1.000000e+00 : f32
    %157 = vector.broadcast %cst_37 : f32 to vector<8x32xf32>
    %158 = arith.subf %156, %157 : vector<8x32xf32>
    %159 = vector.extract_strided_slice %151 {offsets = [0, 96], sizes = [8, 32], strides = [1, 1]} : vector<8x128xf32> to vector<8x32xf32>
    %160 = arith.mulf %153, %140 : vector<8x32xf32>
    %161 = arith.mulf %152, %158 : vector<8x32xf32>
    %162 = arith.addf %160, %161 : vector<8x32xf32>
    %163 = math.tanh %162 : vector<8x32xf32>
    %164 = arith.mulf %159, %163 : vector<8x32xf32>
    %165 = vector.extract_strided_slice %7 {offsets = [7, 0, 0], sizes = [1, 8, 128], strides = [1, 1, 1]} : vector<8x8x128xf32> to vector<1x8x128xf32>
    %166 = vector.shape_cast %165 : vector<1x8x128xf32> to vector<8x128xf32>
    %cst_38 = arith.constant dense<0.000000e+00> : vector<8x128xf32>
    %167 = tpu.matmul %164, %8, %cst_38 {dimension_numbers = #tpu.dot_dimension_numbers<[1], [0], [0], [1], [0, 0, 1, 1], [], []>} : vector<8x32xf32>, vector<32x128xf32>, vector<8x128xf32> -> vector<8x128xf32>
    %168 = arith.addf %166, %167 : vector<8x128xf32>
    %169 = arith.negf %168 : vector<8x128xf32>
    %170 = math.exp %169 : vector<8x128xf32>
    %cst_39 = arith.constant 1.000000e+00 : f32
    %171 = vector.broadcast %cst_39 : f32 to vector<8x128xf32>
    %172 = arith.addf %171, %170 : vector<8x128xf32>
    %173 = arith.divf %171, %172 : vector<8x128xf32>
    %174 = vector.extract_strided_slice %173 {offsets = [0, 0], sizes = [8, 32], strides = [1, 1]} : vector<8x128xf32> to vector<8x32xf32>
    %175 = vector.extract_strided_slice %173 {offsets = [0, 32], sizes = [8, 32], strides = [1, 1]} : vector<8x128xf32> to vector<8x32xf32>
    %176 = vector.extract_strided_slice %173 {offsets = [0, 64], sizes = [8, 32], strides = [1, 1]} : vector<8x128xf32> to vector<8x32xf32>
    %cst_40 = arith.constant 2.000000e+00 : f32
    %177 = vector.broadcast %cst_40 : f32 to vector<8x32xf32>
    %178 = arith.mulf %177, %176 : vector<8x32xf32>
    %cst_41 = arith.constant 1.000000e+00 : f32
    %179 = vector.broadcast %cst_41 : f32 to vector<8x32xf32>
    %180 = arith.subf %178, %179 : vector<8x32xf32>
    %181 = vector.extract_strided_slice %173 {offsets = [0, 96], sizes = [8, 32], strides = [1, 1]} : vector<8x128xf32> to vector<8x32xf32>
    %182 = arith.mulf %175, %162 : vector<8x32xf32>
    %183 = arith.mulf %174, %180 : vector<8x32xf32>
    %184 = arith.addf %182, %183 : vector<8x32xf32>
    %185 = math.tanh %184 : vector<8x32xf32>
    %186 = arith.mulf %181, %185 : vector<8x32xf32>
    %c0_42 = arith.constant 0 : index
    %c0_43 = arith.constant 0 : index
    %187 = vector.load %arg4[%c0_42, %c0_43] : memref<32x1xf32, #tpu.memory_space<vmem>>, vector<32x1xf32>
    %cst_44 = arith.constant dense<0.000000e+00> : vector<8x1xf32>
    %188 = tpu.matmul %186, %187, %cst_44 {dimension_numbers = #tpu.dot_dimension_numbers<[1], [0], [0], [1], [0, 0, 1, 1], [], []>} : vector<8x32xf32>, vector<32x1xf32>, vector<8x1xf32> -> vector<8x1xf32>
    %c0_45 = arith.constant 0 : index
    %c0_46 = arith.constant 0 : index
    %189 = vector.load %arg5[%c0_45, %c0_46] : memref<1x1xf32, #tpu.memory_space<vmem>>, vector<1x1xf32>
    %190 = vector.broadcast %189 : vector<1x1xf32> to vector<8x1xf32>
    %191 = arith.addf %188, %190 : vector<8x1xf32>
    %c0_47 = arith.constant 0 : index
    %c0_48 = arith.constant 0 : index
    %192 = vector.load %arg6[%c0_47, %c0_48] : memref<8x1xf32, #tpu.memory_space<vmem>>, vector<8x1xf32>
    tpu.vector_store %arg6[%c0_47, %c0_48], %191 {strides = array<i32>} : memref<8x1xf32, #tpu.memory_space<vmem>>, vector<8x1xf32>,
    return
  }
}

</mosaic_0001>

<llo_original>
// kernel: tpu_custom_call.1
$region0: #{tpu_custom_call.1}
  #allocation0 [shape = 'u32[]', space=smem, size = 0x4, offset = 0x4, fixed_abs, tag = 'smem constant byte address 0x4 - core index']
  #allocation1 [shape = 'u32[144,128]{1,0:T(1,128)}', space=vmem, size = 0x12000, scoped, tag = 'internal scratch']
  #allocation2 [shape = 'f32[1,1]{1,0:T(1,128)S(1)}', space=vmem, size = 0x200, scoped, tag = 'scoped memory for tpu_custom_call.1']
  %s0 = inlined_call_operand.vmem [shape: f32[8,8,4], index: 0, kind: input, shape index: {}]
  %s1 = inlined_call_operand.vmem [shape: f32[4,128], index: 1, kind: input, shape index: {}]
  %s2 = inlined_call_operand.vmem [shape: f32[32,128], index: 2, kind: input, shape index: {}]
  %s3 = inlined_call_operand.vmem [shape: f32[1,128], index: 3, kind: input, shape index: {}]
  %s4 = inlined_call_operand.vmem [shape: f32[32,1], index: 4, kind: input, shape index: {}]
  %s5 = inlined_call_operand.<no memory space> [shape: f32[1,1], index: 5, kind: input, shape index: {}]
  %s6 = inlined_call_operand.vmem [shape: f32[8,1], index: 6, kind: output, shape index: {}]
  %s7 = sld [smem:[#allocation0]]
  $region34: #{tpu_custom_call.1} parent=0
    _
  %s9 = ssub.s32 1, %s7
  %s10 = scalar_select 0, %s9, %s7
  %v11 = vstv %s5
  %12 = vst [vmem:[#allocation2] sm:$0x1] %v11
  // Predicated region
  $region2: #{tpu_custom_call.1} parent=0 // pred_check
    _
  $region3: #{tpu_custom_call.1} parent=0 // pred_check_branch
    %14 = sbr.rel (0) target = $region5
  $region4: #{tpu_custom_call.1} parent=0 // pred_region
    _
  $region5: #{tpu_custom_call.1} parent=0 // pred_fallthru
    _
  // Predicated region
  $region6: #{tpu_custom_call.1} parent=0 // pred_check
    _
  $region7: #{tpu_custom_call.1} parent=0 // pred_check_branch
    %16 = sbr.rel (0) target = $region9
  $region8: #{tpu_custom_call.1} parent=0 // pred_region
    _
  $region9: #{tpu_custom_call.1} parent=0 // pred_fallthru
    _
  // Predicated region
  $region10: #{tpu_custom_call.1} parent=0 // pred_check
    _
  $region11: #{tpu_custom_call.1} parent=0 // pred_check_branch
    %18 = sbr.rel (0) target = $region13
  $region12: #{tpu_custom_call.1} parent=0 // pred_region
    _
  $region13: #{tpu_custom_call.1} parent=0 // pred_fallthru
    _
  // Predicated region
  $region14: #{tpu_custom_call.1} parent=0 // pred_check
    _
  $region15: #{tpu_custom_call.1} parent=0 // pred_check_branch
    %20 = sbr.rel (0) target = $region17
  $region16: #{tpu_custom_call.1} parent=0 // pred_region
    _
  $region17: #{tpu_custom_call.1} parent=0 // pred_fallthru
    _
  // Predicated region
  $region18: #{tpu_custom_call.1} parent=0 // pred_check
    _
  $region19: #{tpu_custom_call.1} parent=0 // pred_check_branch
    %22 = sbr.rel (0) target = $region21
  $region20: #{tpu_custom_call.1} parent=0 // pred_region
    _
  $region21: #{tpu_custom_call.1} parent=0 // pred_fallthru
    _
  // Predicated region
  $region22: #{tpu_custom_call.1} parent=0 // pred_check
    _
  $region23: #{tpu_custom_call.1} parent=0 // pred_check_branch
    %24 = sbr.rel (0) target = $region25
  $region24: #{tpu_custom_call.1} parent=0 // pred_region
    _
  $region25: #{tpu_custom_call.1} parent=0 // pred_fallthru
    _
  %v25 = vld [vmem:[%s0] sm:$0xff]
  %v26 = vld [vmem:[%s0 + $0x8] sm:$0xff]
  %v27 = vld [vmem:[%s0 + $0x10] sm:$0xff]
  %v28 = vld [vmem:[%s0 + $0x18] sm:$0xff]
  %v29 = vld [vmem:[%s0 + $0x20] sm:$0xff]
  %v30 = vld [vmem:[%s0 + $0x28] sm:$0xff]
  %v31 = vld [vmem:[%s0 + $0x30] sm:$0xff]
  %v32 = vld [vmem:[%s0 + $0x38] sm:$0xff]
  %v33 = vld [vmem:[%s1] sm:$0xf]
  %v34 = vld [vmem:[%s3] sm:$0x1]
  %v36 = vlaneseq
  %v37 = vshrl.u32 %v36, 7
  %v38 = vsub.s32 0, %v37
  %v39 = vrot.slane %v34, %v38
  %vm41 = vcmask 31744
  %v43 = vsel %vm41, %v25, 0
  %v46 = vsel %vm41, %v26, 0
  %v49 = vsel %vm41, %v27, 0
  %v52 = vsel %vm41, %v28, 0
  %v55 = vsel %vm41, %v29, 0
  %v58 = vsel %vm41, %v30, 0
  %v61 = vsel %vm41, %v31, 0
  %v64 = vsel %vm41, %v32, 0
  %vm66 = vcmask 1043456
  %v68 = vsel %vm66, %v33, 0
  %70 = vmatprep.subr.mxu0 0.0
  %71 = vmatpush1.msra.mxu0 0.0
  %72 = vmatprep.subr.mxu0 0.0
  %73 = vmatpush1.msra.mxu0 0.0
  %74 = vmatprep.subr.mxu0 0.0
  %75 = vmatpush1.msra.mxu0 0.0
  %76 = vmatprep.subr.mxu0 0.0
  %77 = vmatpush1.msra.mxu0 0.0
  %78 = vmatprep.subr.mxu0 0.0
  %79 = vmatpush1.msra.mxu0 0.0
  %80 = vmatprep.subr.mxu0 0.0
  %81 = vmatpush1.msra.mxu0 0.0
  %82 = vmatprep.subr.mxu0 0.0
  %83 = vmatpush1.msra.mxu0 0.0
  %84 = vmatprep.subr.mxu0 0.0
  %85 = vmatpush1.msra.mxu0 0.0
  %86 = vmatprep.subr.mxu0 0.0
  %87 = vmatpush1.msra.mxu0 0.0
  %88 = vmatprep.subr.mxu0 0.0
  %89 = vmatpush1.msra.mxu0 0.0
  %90 = vmatprep.subr.mxu0 0.0
  %91 = vmatpush1.msra.mxu0 0.0
  %92 = vmatprep.subr.mxu0 0.0
  %93 = vmatpush1.msra.mxu0 0.0
  %94 = vmatprep.subr.mxu0 0.0
  %95 = vmatpush1.msra.mxu0 0.0
  %96 = vmatprep.subr.mxu0 0.0
  %97 = vmatpush1.msra.mxu0 0.0
  %98 = vmatprep.subr.mxu0 0.0
  %99 = vmatpush1.msra.mxu0 0.0
  %100 = vmatprep.subr.mxu0 0.0
  %101 = vmatpush1.msra.mxu0 %v68
  %102 = vmatprep.subr.mxu0 0.0
  %103 = vmatpush2.msra.mxu0 0.0
  %104 = vmatprep.subr.mxu0 0.0
  %105 = vmatpush2.msra.mxu0 0.0
  %106 = vmatprep.subr.mxu0 0.0
  %107 = vmatpush2.msra.mxu0 0.0
  %108 = vmatprep.subr.mxu0 0.0
  %109 = vmatpush2.msra.mxu0 0.0
  %110 = vmatprep.subr.mxu0 0.0
  %111 = vmatpush2.msra.mxu0 0.0
  %112 = vmatprep.subr.mxu0 0.0
  %113 = vmatpush2.msra.mxu0 0.0
  %114 = vmatprep.subr.mxu0 0.0
  %115 = vmatpush2.msra.mxu0 0.0
  %116 = vmatprep.subr.mxu0 0.0
  %117 = vmatpush2.msra.mxu0 0.0
  %118 = vmatprep.subr.mxu0 0.0
  %119 = vmatpush2.msra.mxu0 0.0
  %120 = vmatprep.subr.mxu0 0.0
  %121 = vmatpush2.msra.mxu0 0.0
  %122 = vmatprep.subr.mxu0 0.0
  %123 = vmatpush2.msra.mxu0 0.0
  %124 = vmatprep.subr.mxu0 0.0
  %125 = vmatpush2.msra.mxu0 0.0
  %126 = vmatprep.subr.mxu0 0.0
  %127 = vmatpush2.msra.mxu0 0.0
  %128 = vmatprep.subr.mxu0 0.0
  %129 = vmatpush2.msra.mxu0 0.0
  %130 = vmatprep.subr.mxu0 0.0
  %131 = vmatpush2.msra.mxu0 0.0
  %132 = vmatprep.subr.mxu0 0.0
  %133 = vmatpush2.msra.mxu0 0.0
  %134 = vmatprep.mubr.f32.mxu0 0.0
  %135 = vmatmul.mubr.f32.gmra.mxu0 %v43
  %v136 = vpop.f32.mrf.mxu0
  %v137 = vadd.f32 %v39, %v136
  %v138 = vpop.f32.mrf.mxu0
  %139 = vmatprep.mubr.f32.mxu0 0.0
  %140 = vmatmul.mubr.f32.gmra.mxu0 %v46
  %v141 = vpop.f32.mrf.mxu0
  %v142 = vadd.f32 %v39, %v141
  %v143 = vpop.f32.mrf.mxu0
  %144 = vmatprep.mubr.f32.mxu0 0.0
  %145 = vmatmul.mubr.f32.gmra.mxu0 %v49
  %v146 = vpop.f32.mrf.mxu0
  %v147 = vadd.f32 %v39, %v146
  %v148 = vpop.f32.mrf.mxu0
  %149 = vmatprep.mubr.f32.mxu0 0.0
  %150 = vmatmul.mubr.f32.gmra.mxu0 %v52
  %v151 = vpop.f32.mrf.mxu0
  %v152 = vadd.f32 %v39, %v151
  %v153 = vpop.f32.mrf.mxu0
  %154 = vmatprep.mubr.f32.mxu0 0.0
  %155 = vmatmul.mubr.f32.gmra.mxu0 %v55
  %v156 = vpop.f32.mrf.mxu0
  %v157 = vadd.f32 %v39, %v156
  %v158 = vpop.f32.mrf.mxu0
  %159 = vmatprep.mubr.f32.mxu0 0.0
  %160 = vmatmul.mubr.f32.gmra.mxu0 %v58
  %v161 = vpop.f32.mrf.mxu0
  %v162 = vadd.f32 %v39, %v161
  %v163 = vpop.f32.mrf.mxu0
  %164 = vmatprep.mubr.f32.mxu0 0.0
  %165 = vmatmul.mubr.f32.gmra.mxu0 %v61
  %v166 = vpop.f32.mrf.mxu0
  %v167 = vadd.f32 %v39, %v166
  %v168 = vpop.f32.mrf.mxu0
  %169 = vmatprep.mubr.f32.mxu0 0.0
  %170 = vmatmul.mubr.f32.gmra.mxu0 %v64
  %v171 = vpop.f32.mrf.mxu0
  %v172 = vadd.f32 %v39, %v171
  %v173 = vpop.f32.mrf.mxu0
  %174 = vdwg.mxu0
  %v175 = vld [vmem:[%s2] sm:$0xff]
  %v176 = vld [vmem:[%s2 + $0x8] sm:$0xff]
  %v177 = vld [vmem:[%s2 + $0x10] sm:$0xff]
  %v178 = vld [vmem:[%s2 + $0x18] sm:$0xff]
  %vm179 = vcmask 261120
  %v181 = vsel %vm179, 0.0, 0
  %183 = vmatprep.subr.mxu0 0.0
  %184 = vmatpush1.msra.mxu0 0.0
  %185 = vmatprep.subr.mxu0 0.0
  %186 = vmatpush1.msra.mxu0 0.0
  %187 = vmatprep.subr.mxu0 0.0
  %188 = vmatpush1.msra.mxu0 0.0
  %189 = vmatprep.subr.mxu0 0.0
  %190 = vmatpush1.msra.mxu0 0.0
  %191 = vmatprep.subr.mxu0 0.0
  %192 = vmatpush1.msra.mxu0 0.0
  %193 = vmatprep.subr.mxu0 0.0
  %194 = vmatpush1.msra.mxu0 0.0
  %195 = vmatprep.subr.mxu0 0.0
  %196 = vmatpush1.msra.mxu0 0.0
  %197 = vmatprep.subr.mxu0 0.0
  %198 = vmatpush1.msra.mxu0 0.0
  %199 = vmatprep.subr.mxu0 0.0
  %200 = vmatpush1.msra.mxu0 0.0
  %201 = vmatprep.subr.mxu0 0.0
  %202 = vmatpush1.msra.mxu0 0.0
  %203 = vmatprep.subr.mxu0 0.0
  %204 = vmatpush1.msra.mxu0 0.0
  %205 = vmatprep.subr.mxu0 0.0
  %206 = vmatpush1.msra.mxu0 0.0
  %207 = vmatprep.subr.mxu0 0.0
  %208 = vmatpush1.msra.mxu0 %v178
  %209 = vmatprep.subr.mxu0 0.0
  %210 = vmatpush1.msra.mxu0 %v177
  %211 = vmatprep.subr.mxu0 0.0
  %212 = vmatpush1.msra.mxu0 %v176
  %213 = vmatprep.subr.mxu0 0.0
  %214 = vmatpush1.msra.mxu0 %v175
  %215 = vmatprep.subr.mxu0 0.0
  %216 = vmatpush2.msra.mxu0 0.0
  %217 = vmatprep.subr.mxu0 0.0
  %218 = vmatpush2.msra.mxu0 0.0
  %219 = vmatprep.subr.mxu0 0.0
  %220 = vmatpush2.msra.mxu0 0.0
  %221 = vmatprep.subr.mxu0 0.0
  %222 = vmatpush2.msra.mxu0 0.0
  %223 = vmatprep.subr.mxu0 0.0
  %224 = vmatpush2.msra.mxu0 0.0
  %225 = vmatprep.subr.mxu0 0.0
  %226 = vmatpush2.msra.mxu0 0.0
  %227 = vmatprep.subr.mxu0 0.0
  %228 = vmatpush2.msra.mxu0 0.0
  %229 = vmatprep.subr.mxu0 0.0
  %230 = vmatpush2.msra.mxu0 0.0
  %231 = vmatprep.subr.mxu0 0.0
  %232 = vmatpush2.msra.mxu0 0.0
  %233 = vmatprep.subr.mxu0 0.0
  %234 = vmatpush2.msra.mxu0 0.0
  %235 = vmatprep.subr.mxu0 0.0
  %236 = vmatpush2.msra.mxu0 0.0
  %237 = vmatprep.subr.mxu0 0.0
  %238 = vmatpush2.msra.mxu0 0.0
  %239 = vmatprep.subr.mxu0 0.0
  %240 = vmatpush2.msra.mxu0 0.0
  %241 = vmatprep.subr.mxu0 0.0
  %242 = vmatpush2.msra.mxu0 0.0
  %243 = vmatprep.subr.mxu0 0.0
  %244 = vmatpush2.msra.mxu0 0.0
  %245 = vmatprep.subr.mxu0 0.0
  %246 = vmatpush2.msra.mxu0 0.0
  %247 = vmatprep.mubr.f32.mxu0 0.0
  %248 = vmatmul.mubr.f32.gmra.mxu0 %v181
  %v249 = vpop.f32.mrf.mxu0
  %v250 = vadd.f32 0.0, %v249
  %v251 = vpop.f32.mrf.mxu0
  %252 = vdwg.mxu0
  %v253 = vadd.f32 %v137, %v250
  %v254 = vxor.u32 %v253, 2147483648
  %v255 = vmul.f32 %v254, 1.442695
  %v256 = vpow.pop %v255
  %v257 = vadd.f32 %v256, 1.0
  %v258 = vrcp.pop %v257
  %v259 = vmul.f32 1.0, %v258
  %v260 = vmul.f32 %v259, 2.0
  %v261 = vsub.f32 %v260, 1.0
  %v262 = vmul.f32 %v259, 0.0
  %264 = vrot.lane.b32.xlu0 %v261, 64
  %v265 = vpop.permute.xlu0 %264
  %v267 = vmul.f32 %v259, %v265
  %269 = vrot.lane.b32.xlu0 %v267, 32
  %v270 = vpop.permute.xlu0 %269
  %v272 = vadd.f32 %v262, %v270
  %v273 = vtanh.pop %v272
  %275 = vrot.lane.b32.xlu0 %v273, 64
  %v276 = vpop.permute.xlu0 %275
  %v278 = vmul.f32 %v259, %v276
  %280 = vrot.lane.b32.xlu0 %v278, 32
  %v281 = vpop.permute.xlu0 %280
  %v282 = vsel %vm179, %v281, 0
  %284 = vmatprep.subr.mxu0 0.0
  %285 = vmatpush1.msra.mxu0 0.0
  %286 = vmatprep.subr.mxu0 0.0
  %287 = vmatpush1.msra.mxu0 0.0
  %288 = vmatprep.subr.mxu0 0.0
  %289 = vmatpush1.msra.mxu0 0.0
  %290 = vmatprep.subr.mxu0 0.0
  %291 = vmatpush1.msra.mxu0 0.0
  %292 = vmatprep.subr.mxu0 0.0
  %293 = vmatpush1.msra.mxu0 0.0
  %294 = vmatprep.subr.mxu0 0.0
  %295 = vmatpush1.msra.mxu0 0.0
  %296 = vmatprep.subr.mxu0 0.0
  %297 = vmatpush1.msra.mxu0 0.0
  %298 = vmatprep.subr.mxu0 0.0
  %299 = vmatpush1.msra.mxu0 0.0
  %300 = vmatprep.subr.mxu0 0.0
  %301 = vmatpush1.msra.mxu0 0.0
  %302 = vmatprep.subr.mxu0 0.0
  %303 = vmatpush1.msra.mxu0 0.0
  %304 = vmatprep.subr.mxu0 0.0
  %305 = vmatpush1.msra.mxu0 0.0
  %306 = vmatprep.subr.mxu0 0.0
  %307 = vmatpush1.msra.mxu0 0.0
  %308 = vmatprep.subr.mxu0 0.0
  %309 = vmatpush1.msra.mxu0 %v178
  %310 = vmatprep.subr.mxu0 0.0
  %311 = vmatpush1.msra.mxu0 %v177
  %312 = vmatprep.subr.mxu0 0.0
  %313 = vmatpush1.msra.mxu0 %v176
  %314 = vmatprep.subr.mxu0 0.0
  %315 = vmatpush1.msra.mxu0 %v175
  %316 = vmatprep.subr.mxu0 0.0
  %317 = vmatpush2.msra.mxu0 0.0
  %318 = vmatprep.subr.mxu0 0.0
  %319 = vmatpush2.msra.mxu0 0.0
  %320 = vmatprep.subr.mxu0 0.0
  %321 = vmatpush2.msra.mxu0 0.0
  %322 = vmatprep.subr.mxu0 0.0
  %323 = vmatpush2.msra.mxu0 0.0
  %324 = vmatprep.subr.mxu0 0.0
  %325 = vmatpush2.msra.mxu0 0.0
  %326 = vmatprep.subr.mxu0 0.0
  %327 = vmatpush2.msra.mxu0 0.0
  %328 = vmatprep.subr.mxu0 0.0
  %329 = vmatpush2.msra.mxu0 0.0
  %330 = vmatprep.subr.mxu0 0.0
  %331 = vmatpush2.msra.mxu0 0.0
  %332 = vmatprep.subr.mxu0 0.0
  %333 = vmatpush2.msra.mxu0 0.0
  %334 = vmatprep.subr.mxu0 0.0
  %335 = vmatpush2.msra.mxu0 0.0
  %336 = vmatprep.subr.mxu0 0.0
  %337 = vmatpush2.msra.mxu0 0.0
  %338 = vmatprep.subr.mxu0 0.0
  %339 = vmatpush2.msra.mxu0 0.0
  %340 = vmatprep.subr.mxu0 0.0
  %341 = vmatpush2.msra.mxu0 0.0
  %342 = vmatprep.subr.mxu0 0.0
  %343 = vmatpush2.msra.mxu0 0.0
  %344 = vmatprep.subr.mxu0 0.0
  %345 = vmatpush2.msra.mxu0 0.0
  %346 = vmatprep.subr.mxu0 0.0
  %347 = vmatpush2.msra.mxu0 0.0
  %348 = vmatprep.mubr.f32.mxu0 0.0
  %349 = vmatmul.mubr.f32.gmra.mxu0 %v282
  %v350 = vpop.f32.mrf.mxu0
  %v351 = vadd.f32 0.0, %v350
  %v352 = vpop.f32.mrf.mxu0
  %353 = vdwg.mxu0
  %v354 = vadd.f32 %v142, %v351
  %v355 = vxor.u32 %v354, 2147483648
  %v356 = vmul.f32 %v355, 1.442695
  %v357 = vpow.pop %v356
  %v358 = vadd.f32 %v357, 1.0
  %v359 = vrcp.pop %v358
  %v360 = vmul.f32 1.0, %v359
  %v361 = vmul.f32 %v360, 2.0
  %v362 = vsub.f32 %v361, 1.0
  %v363 = vmul.f32 %v360, %v272
  %365 = vrot.lane.b32.xlu0 %v362, 64
  %v366 = vpop.permute.xlu0 %365
  %v368 = vmul.f32 %v360, %v366
  %370 = vrot.lane.b32.xlu0 %v368, 32
  %v371 = vpop.permute.xlu0 %370
  %v373 = vadd.f32 %v363, %v371
  %v374 = vtanh.pop %v373
  %376 = vrot.lane.b32.xlu0 %v374, 64
  %v377 = vpop.permute.xlu0 %376
  %v379 = vmul.f32 %v360, %v377
  %381 = vrot.lane.b32.xlu0 %v379, 32
  %v382 = vpop.permute.xlu0 %381
  %v383 = vsel %vm179, %v382, 0
  %385 = vmatprep.subr.mxu0 0.0
  %386 = vmatpush1.msra.mxu0 0.0
  %387 = vmatprep.subr.mxu0 0.0
  %388 = vmatpush1.msra.mxu0 0.0
  %389 = vmatprep.subr.mxu0 0.0
  %390 = vmatpush1.msra.mxu0 0.0
  %391 = vmatprep.subr.mxu0 0.0
  %392 = vmatpush1.msra.mxu0 0.0
  %393 = vmatprep.subr.mxu0 0.0
  %394 = vmatpush1.msra.mxu0 0.0
  %395 = vmatprep.subr.mxu0 0.0
  %396 = vmatpush1.msra.mxu0 0.0
  %397 = vmatprep.subr.mxu0 0.0
  %398 = vmatpush1.msra.mxu0 0.0
  %399 = vmatprep.subr.mxu0 0.0
  %400 = vmatpush1.msra.mxu0 0.0
  %401 = vmatprep.subr.mxu0 0.0
  %402 = vmatpush1.msra.mxu0 0.0
  %403 = vmatprep.subr.mxu0 0.0
  %404 = vmatpush1.msra.mxu0 0.0
  %405 = vmatprep.subr.mxu0 0.0
  %406 = vmatpush1.msra.mxu0 0.0
  %407 = vmatprep.subr.mxu0 0.0
  %408 = vmatpush1.msra.mxu0 0.0
  %409 = vmatprep.subr.mxu0 0.0
  %410 = vmatpush1.msra.mxu0 %v178
  %411 = vmatprep.subr.mxu0 0.0
  %412 = vmatpush1.msra.mxu0 %v177
  %413 = vmatprep.subr.mxu0 0.0
  %414 = vmatpush1.msra.mxu0 %v176
  %415 = vmatprep.subr.mxu0 0.0
  %416 = vmatpush1.msra.mxu0 %v175
  %417 = vmatprep.subr.mxu0 0.0
  %418 = vmatpush2.msra.mxu0 0.0
  %419 = vmatprep.subr.mxu0 0.0
  %420 = vmatpush2.msra.mxu0 0.0
  %421 = vmatprep.subr.mxu0 0.0
  %422 = vmatpush2.msra.mxu0 0.0
  %423 = vmatprep.subr.mxu0 0.0
  %424 = vmatpush2.msra.mxu0 0.0
  %425 = vmatprep.subr.mxu0 0.0
  %426 = vmatpush2.msra.mxu0 0.0
  %427 = vmatprep.subr.mxu0 0.0
  %428 = vmatpush2.msra.mxu0 0.0
  %429 = vmatprep.subr.mxu0 0.0
  %430 = vmatpush2.msra.mxu0 0.0
  %431 = vmatprep.subr.mxu0 0.0
  %432 = vmatpush2.msra.mxu0 0.0
  %433 = vmatprep.subr.mxu0 0.0
  %434 = vmatpush2.msra.mxu0 0.0
  %435 = vmatprep.subr.mxu0 0.0
  %436 = vmatpush2.msra.mxu0 0.0
  %437 = vmatprep.subr.mxu0 0.0
  %438 = vmatpush2.msra.mxu0 0.0
  %439 = vmatprep.subr.mxu0 0.0
  %440 = vmatpush2.msra.mxu0 0.0
  %441 = vmatprep.subr.mxu0 0.0
  %442 = vmatpush2.msra.mxu0 0.0
  %443 = vmatprep.subr.mxu0 0.0
  %444 = vmatpush2.msra.mxu0 0.0
  %445 = vmatprep.subr.mxu0 0.0
  %446 = vmatpush2.msra.mxu0 0.0
  %447 = vmatprep.subr.mxu0 0.0
  %448 = vmatpush2.msra.mxu0 0.0
  %449 = vmatprep.mubr.f32.mxu0 0.0
  %450 = vmatmul.mubr.f32.gmra.mxu0 %v383
  %v451 = vpop.f32.mrf.mxu0
  %v452 = vadd.f32 0.0, %v451
  %v453 = vpop.f32.mrf.mxu0
  %454 = vdwg.mxu0
  %v455 = vadd.f32 %v147, %v452
  %v456 = vxor.u32 %v455, 2147483648
  %v457 = vmul.f32 %v456, 1.442695
  %v458 = vpow.pop %v457
  %v459 = vadd.f32 %v458, 1.0
  %v460 = vrcp.pop %v459
  %v461 = vmul.f32 1.0, %v460
  %v462 = vmul.f32 %v461, 2.0
  %v463 = vsub.f32 %v462, 1.0
  %v464 = vmul.f32 %v461, %v373
  %466 = vrot.lane.b32.xlu0 %v463, 64
  %v467 = vpop.permute.xlu0 %466
  %v469 = vmul.f32 %v461, %v467
  %471 = vrot.lane.b32.xlu0 %v469, 32
  %v472 = vpop.permute.xlu0 %471
  %v474 = vadd.f32 %v464, %v472
  %v475 = vtanh.pop %v474
  %477 = vrot.lane.b32.xlu0 %v475, 64
  %v478 = vpop.permute.xlu0 %477
  %v480 = vmul.f32 %v461, %v478
  %482 = vrot.lane.b32.xlu0 %v480, 32
  %v483 = vpop.permute.xlu0 %482
  %v484 = vsel %vm179, %v483, 0
  %486 = vmatprep.subr.mxu0 0.0
  %487 = vmatpush1.msra.mxu0 0.0
  %488 = vmatprep.subr.mxu0 0.0
  %489 = vmatpush1.msra.mxu0 0.0
  %490 = vmatprep.subr.mxu0 0.0
  %491 = vmatpush1.msra.mxu0 0.0
  %492 = vmatprep.subr.mxu0 0.0
  %493 = vmatpush1.msra.mxu0 0.0
  %494 = vmatprep.subr.mxu0 0.0
  %495 = vmatpush1.msra.mxu0 0.0
  %496 = vmatprep.subr.mxu0 0.0
  %497 = vmatpush1.msra.mxu0 0.0
  %498 = vmatprep.subr.mxu0 0.0
  %499 = vmatpush1.msra.mxu0 0.0
  %500 = vmatprep.subr.mxu0 0.0
  %501 = vmatpush1.msra.mxu0 0.0
  %502 = vmatprep.subr.mxu0 0.0
  %503 = vmatpush1.msra.mxu0 0.0
  %504 = vmatprep.subr.mxu0 0.0
  %505 = vmatpush1.msra.mxu0 0.0
  %506 = vmatprep.subr.mxu0 0.0
  %507 = vmatpush1.msra.mxu0 0.0
  %508 = vmatprep.subr.mxu0 0.0
  %509 = vmatpush1.msra.mxu0 0.0
  %510 = vmatprep.subr.mxu0 0.0
  %511 = vmatpush1.msra.mxu0 %v178
  %512 = vmatprep.subr.mxu0 0.0
  %513 = vmatpush1.msra.mxu0 %v177
  %514 = vmatprep.subr.mxu0 0.0
  %515 = vmatpush1.msra.mxu0 %v176
  %516 = vmatprep.subr.mxu0 0.0
  %517 = vmatpush1.msra.mxu0 %v175
  %518 = vmatprep.subr.mxu0 0.0
  %519 = vmatpush2.msra.mxu0 0.0
  %520 = vmatprep.subr.mxu0 0.0
  %521 = vmatpush2.msra.mxu0 0.0
  %522 = vmatprep.subr.mxu0 0.0
  %523 = vmatpush2.msra.mxu0 0.0
  %524 = vmatprep.subr.mxu0 0.0
  %525 = vmatpush2.msra.mxu0 0.0
  %526 = vmatprep.subr.mxu0 0.0
  %527 = vmatpush2.msra.mxu0 0.0
  %528 = vmatprep.subr.mxu0 0.0
  %529 = vmatpush2.msra.mxu0 0.0
  %530 = vmatprep.subr.mxu0 0.0
  %531 = vmatpush2.msra.mxu0 0.0
  %532 = vmatprep.subr.mxu0 0.0
  %533 = vmatpush2.msra.mxu0 0.0
  %534 = vmatprep.subr.mxu0 0.0
  %535 = vmatpush2.msra.mxu0 0.0
  %536 = vmatprep.subr.mxu0 0.0
  %537 = vmatpush2.msra.mxu0 0.0
  %538 = vmatprep.subr.mxu0 0.0
  %539 = vmatpush2.msra.mxu0 0.0
  %540 = vmatprep.subr.mxu0 0.0
  %541 = vmatpush2.msra.mxu0 0.0
  %542 = vmatprep.subr.mxu0 0.0
  %543 = vmatpush2.msra.mxu0 0.0
  %544 = vmatprep.subr.mxu0 0.0
  %545 = vmatpush2.msra.mxu0 0.0
  %546 = vmatprep.subr.mxu0 0.0
  %547 = vmatpush2.msra.mxu0 0.0
  %548 = vmatprep.subr.mxu0 0.0
  %549 = vmatpush2.msra.mxu0 0.0
  %550 = vmatprep.mubr.f32.mxu0 0.0
  %551 = vmatmul.mubr.f32.gmra.mxu0 %v484
  %v552 = vpop.f32.mrf.mxu0
  %v553 = vadd.f32 0.0, %v552
  %v554 = vpop.f32.mrf.mxu0
  %555 = vdwg.mxu0
  %v556 = vadd.f32 %v152, %v553
  %v557 = vxor.u32 %v556, 2147483648
  %v558 = vmul.f32 %v557, 1.442695
  %v559 = vpow.pop %v558
  %v560 = vadd.f32 %v559, 1.0
  %v561 = vrcp.pop %v560
  %v562 = vmul.f32 1.0, %v561
  %v563 = vmul.f32 %v562, 2.0
  %v564 = vsub.f32 %v563, 1.0
  %v565 = vmul.f32 %v562, %v474
  %567 = vrot.lane.b32.xlu0 %v564, 64
  %v568 = vpop.permute.xlu0 %567
  %v570 = vmul.f32 %v562, %v568
  %572 = vrot.lane.b32.xlu0 %v570, 32
  %v573 = vpop.permute.xlu0 %572
  %v575 = vadd.f32 %v565, %v573
  %v576 = vtanh.pop %v575
  %578 = vrot.lane.b32.xlu0 %v576, 64
  %v579 = vpop.permute.xlu0 %578
  %v581 = vmul.f32 %v562, %v579
  %583 = vrot.lane.b32.xlu0 %v581, 32
  %v584 = vpop.permute.xlu0 %583
  %v585 = vsel %vm179, %v584, 0
  %587 = vmatprep.subr.mxu0 0.0
  %588 = vmatpush1.msra.mxu0 0.0
  %589 = vmatprep.subr.mxu0 0.0
  %590 = vmatpush1.msra.mxu0 0.0
  %591 = vmatprep.subr.mxu0 0.0
  %592 = vmatpush1.msra.mxu0 0.0
  %593 = vmatprep.subr.mxu0 0.0
  %594 = vmatpush1.msra.mxu0 0.0
  %595 = vmatprep.subr.mxu0 0.0
  %596 = vmatpush1.msra.mxu0 0.0
  %597 = vmatprep.subr.mxu0 0.0
  %598 = vmatpush1.msra.mxu0 0.0
  %599 = vmatprep.subr.mxu0 0.0
  %600 = vmatpush1.msra.mxu0 0.0
  %601 = vmatprep.subr.mxu0 0.0
  %602 = vmatpush1.msra.mxu0 0.0
  %603 = vmatprep.subr.mxu0 0.0
  %604 = vmatpush1.msra.mxu0 0.0
  %605 = vmatprep.subr.mxu0 0.0
  %606 = vmatpush1.msra.mxu0 0.0
  %607 = vmatprep.subr.mxu0 0.0
  %608 = vmatpush1.msra.mxu0 0.0
  %609 = vmatprep.subr.mxu0 0.0
  %610 = vmatpush1.msra.mxu0 0.0
  %611 = vmatprep.subr.mxu0 0.0
  %612 = vmatpush1.msra.mxu0 %v178
  %613 = vmatprep.subr.mxu0 0.0
  %614 = vmatpush1.msra.mxu0 %v177
  %615 = vmatprep.subr.mxu0 0.0
  %616 = vmatpush1.msra.mxu0 %v176
  %617 = vmatprep.subr.mxu0 0.0
  %618 = vmatpush1.msra.mxu0 %v175
  %619 = vmatprep.subr.mxu0 0.0
  %620 = vmatpush2.msra.mxu0 0.0
  %621 = vmatprep.subr.mxu0 0.0
  %622 = vmatpush2.msra.mxu0 0.0
  %623 = vmatprep.subr.mxu0 0.0
  %624 = vmatpush2.msra.mxu0 0.0
  %625 = vmatprep.subr.mxu0 0.0
  %626 = vmatpush2.msra.mxu0 0.0
  %627 = vmatprep.subr.mxu0 0.0
  %628 = vmatpush2.msra.mxu0 0.0
  %629 = vmatprep.subr.mxu0 0.0
  %630 = vmatpush2.msra.mxu0 0.0
  %631 = vmatprep.subr.mxu0 0.0
  %632 = vmatpush2.msra.mxu0 0.0
  %633 = vmatprep.subr.mxu0 0.0
  %634 = vmatpush2.msra.mxu0 0.0
  %635 = vmatprep.subr.mxu0 0.0
  %636 = vmatpush2.msra.mxu0 0.0
  %637 = vmatprep.subr.mxu0 0.0
  %638 = vmatpush2.msra.mxu0 0.0
  %639 = vmatprep.subr.mxu0 0.0
  %640 = vmatpush2.msra.mxu0 0.0
  %641 = vmatprep.subr.mxu0 0.0
  %642 = vmatpush2.msra.mxu0 0.0
  %643 = vmatprep.subr.mxu0 0.0
  %644 = vmatpush2.msra.mxu0 0.0
  %645 = vmatprep.subr.mxu0 0.0
  %646 = vmatpush2.msra.mxu0 0.0
  %647 = vmatprep.subr.mxu0 0.0
  %648 = vmatpush2.msra.mxu0 0.0
  %649 = vmatprep.subr.mxu0 0.0
  %650 = vmatpush2.msra.mxu0 0.0
  %651 = vmatprep.mubr.f32.mxu0 0.0
  %652 = vmatmul.mubr.f32.gmra.mxu0 %v585
  %v653 = vpop.f32.mrf.mxu0
  %v654 = vadd.f32 0.0, %v653
  %v655 = vpop.f32.mrf.mxu0
  %656 = vdwg.mxu0
  %v657 = vadd.f32 %v157, %v654
  %v658 = vxor.u32 %v657, 2147483648
  %v659 = vmul.f32 %v658, 1.442695
  %v660 = vpow.pop %v659
  %v661 = vadd.f32 %v660, 1.0
  %v662 = vrcp.pop %v661
  %v663 = vmul.f32 1.0, %v662
  %v664 = vmul.f32 %v663, 2.0
  %v665 = vsub.f32 %v664, 1.0
  %v666 = vmul.f32 %v663, %v575
  %668 = vrot.lane.b32.xlu0 %v665, 64
  %v669 = vpop.permute.xlu0 %668
  %v671 = vmul.f32 %v663, %v669
  %673 = vrot.lane.b32.xlu0 %v671, 32
  %v674 = vpop.permute.xlu0 %673
  %v676 = vadd.f32 %v666, %v674
  %v677 = vtanh.pop %v676
  %679 = vrot.lane.b32.xlu0 %v677, 64
  %v680 = vpop.permute.xlu0 %679
  %v682 = vmul.f32 %v663, %v680
  %684 = vrot.lane.b32.xlu0 %v682, 32
  %v685 = vpop.permute.xlu0 %684
  %v686 = vsel %vm179, %v685, 0
  %688 = vmatprep.subr.mxu0 0.0
  %689 = vmatpush1.msra.mxu0 0.0
  %690 = vmatprep.subr.mxu0 0.0
  %691 = vmatpush1.msra.mxu0 0.0
  %692 = vmatprep.subr.mxu0 0.0
  %693 = vmatpush1.msra.mxu0 0.0
  %694 = vmatprep.subr.mxu0 0.0
  %695 = vmatpush1.msra.mxu0 0.0
  %696 = vmatprep.subr.mxu0 0.0
  %697 = vmatpush1.msra.mxu0 0.0
  %698 = vmatprep.subr.mxu0 0.0
  %699 = vmatpush1.msra.mxu0 0.0
  %700 = vmatprep.subr.mxu0 0.0
  %701 = vmatpush1.msra.mxu0 0.0
  %702 = vmatprep.subr.mxu0 0.0
  %703 = vmatpush1.msra.mxu0 0.0
  %704 = vmatprep.subr.mxu0 0.0
  %705 = vmatpush1.msra.mxu0 0.0
  %706 = vmatprep.subr.mxu0 0.0
  %707 = vmatpush1.msra.mxu0 0.0
  %708 = vmatprep.subr.mxu0 0.0
  %709 = vmatpush1.msra.mxu0 0.0
  %710 = vmatprep.subr.mxu0 0.0
  %711 = vmatpush1.msra.mxu0 0.0
  %712 = vmatprep.subr.mxu0 0.0
  %713 = vmatpush1.msra.mxu0 %v178
  %714 = vmatprep.subr.mxu0 0.0
  %715 = vmatpush1.msra.mxu0 %v177
  %716 = vmatprep.subr.mxu0 0.0
  %717 = vmatpush1.msra.mxu0 %v176
  %718 = vmatprep.subr.mxu0 0.0
  %719 = vmatpush1.msra.mxu0 %v175
  %720 = vmatprep.subr.mxu0 0.0
  %721 = vmatpush2.msra.mxu0 0.0
  %722 = vmatprep.subr.mxu0 0.0
  %723 = vmatpush2.msra.mxu0 0.0
  %724 = vmatprep.subr.mxu0 0.0
  %725 = vmatpush2.msra.mxu0 0.0
  %726 = vmatprep.subr.mxu0 0.0
  %727 = vmatpush2.msra.mxu0 0.0
  %728 = vmatprep.subr.mxu0 0.0
  %729 = vmatpush2.msra.mxu0 0.0
  %730 = vmatprep.subr.mxu0 0.0
  %731 = vmatpush2.msra.mxu0 0.0
  %732 = vmatprep.subr.mxu0 0.0
  %733 = vmatpush2.msra.mxu0 0.0
  %734 = vmatprep.subr.mxu0 0.0
  %735 = vmatpush2.msra.mxu0 0.0
  %736 = vmatprep.subr.mxu0 0.0
  %737 = vmatpush2.msra.mxu0 0.0
  %738 = vmatprep.subr.mxu0 0.0
  %739 = vmatpush2.msra.mxu0 0.0
  %740 = vmatprep.subr.mxu0 0.0
  %741 = vmatpush2.msra.mxu0 0.0
  %742 = vmatprep.subr.mxu0 0.0
  %743 = vmatpush2.msra.mxu0 0.0
  %744 = vmatprep.subr.mxu0 0.0
  %745 = vmatpush2.msra.mxu0 0.0
  %746 = vmatprep.subr.mxu0 0.0
  %747 = vmatpush2.msra.mxu0 0.0
  %748 = vmatprep.subr.mxu0 0.0
  %749 = vmatpush2.msra.mxu0 0.0
  %750 = vmatprep.subr.mxu0 0.0
  %751 = vmatpush2.msra.mxu0 0.0
  %752 = vmatprep.mubr.f32.mxu0 0.0
  %753 = vmatmul.mubr.f32.gmra.mxu0 %v686
  %v754 = vpop.f32.mrf.mxu0
  %v755 = vadd.f32 0.0, %v754
  %v756 = vpop.f32.mrf.mxu0
  %757 = vdwg.mxu0
  %v758 = vadd.f32 %v162, %v755
  %v759 = vxor.u32 %v758, 2147483648
  %v760 = vmul.f32 %v759, 1.442695
  %v761 = vpow.pop %v760
  %v762 = vadd.f32 %v761, 1.0
  %v763 = vrcp.pop %v762
  %v764 = vmul.f32 1.0, %v763
  %v765 = vmul.f32 %v764, 2.0
  %v766 = vsub.f32 %v765, 1.0
  %v767 = vmul.f32 %v764, %v676
  %769 = vrot.lane.b32.xlu0 %v766, 64
  %v770 = vpop.permute.xlu0 %769
  %v772 = vmul.f32 %v764, %v770
  %774 = vrot.lane.b32.xlu0 %v772, 32
  %v775 = vpop.permute.xlu0 %774
  %v777 = vadd.f32 %v767, %v775
  %v778 = vtanh.pop %v777
  %780 = vrot.lane.b32.xlu0 %v778, 64
  %v781 = vpop.permute.xlu0 %780
  %v783 = vmul.f32 %v764, %v781
  %785 = vrot.lane.b32.xlu0 %v783, 32
  %v786 = vpop.permute.xlu0 %785
  %v787 = vsel %vm179, %v786, 0
  %789 = vmatprep.subr.mxu0 0.0
  %790 = vmatpush1.msra.mxu0 0.0
  %791 = vmatprep.subr.mxu0 0.0
  %792 = vmatpush1.msra.mxu0 0.0
  %793 = vmatprep.subr.mxu0 0.0
  %794 = vmatpush1.msra.mxu0 0.0
  %795 = vmatprep.subr.mxu0 0.0
  %796 = vmatpush1.msra.mxu0 0.0
  %797 = vmatprep.subr.mxu0 0.0
  %798 = vmatpush1.msra.mxu0 0.0
  %799 = vmatprep.subr.mxu0 0.0
  %800 = vmatpush1.msra.mxu0 0.0
  %801 = vmatprep.subr.mxu0 0.0
  %802 = vmatpush1.msra.mxu0 0.0
  %803 = vmatprep.subr.mxu0 0.0
  %804 = vmatpush1.msra.mxu0 0.0
  %805 = vmatprep.subr.mxu0 0.0
  %806 = vmatpush1.msra.mxu0 0.0
  %807 = vmatprep.subr.mxu0 0.0
  %808 = vmatpush1.msra.mxu0 0.0
  %809 = vmatprep.subr.mxu0 0.0
  %810 = vmatpush1.msra.mxu0 0.0
  %811 = vmatprep.subr.mxu0 0.0
  %812 = vmatpush1.msra.mxu0 0.0
  %813 = vmatprep.subr.mxu0 0.0
  %814 = vmatpush1.msra.mxu0 %v178
  %815 = vmatprep.subr.mxu0 0.0
  %816 = vmatpush1.msra.mxu0 %v177
  %817 = vmatprep.subr.mxu0 0.0
  %818 = vmatpush1.msra.mxu0 %v176
  %819 = vmatprep.subr.mxu0 0.0
  %820 = vmatpush1.msra.mxu0 %v175
  %821 = vmatprep.subr.mxu0 0.0
  %822 = vmatpush2.msra.mxu0 0.0
  %823 = vmatprep.subr.mxu0 0.0
  %824 = vmatpush2.msra.mxu0 0.0
  %825 = vmatprep.subr.mxu0 0.0
  %826 = vmatpush2.msra.mxu0 0.0
  %827 = vmatprep.subr.mxu0 0.0
  %828 = vmatpush2.msra.mxu0 0.0
  %829 = vmatprep.subr.mxu0 0.0
  %830 = vmatpush2.msra.mxu0 0.0
  %831 = vmatprep.subr.mxu0 0.0
  %832 = vmatpush2.msra.mxu0 0.0
  %833 = vmatprep.subr.mxu0 0.0
  %834 = vmatpush2.msra.mxu0 0.0
  %835 = vmatprep.subr.mxu0 0.0
  %836 = vmatpush2.msra.mxu0 0.0
  %837 = vmatprep.subr.mxu0 0.0
  %838 = vmatpush2.msra.mxu0 0.0
  %839 = vmatprep.subr.mxu0 0.0
  %840 = vmatpush2.msra.mxu0 0.0
  %841 = vmatprep.subr.mxu0 0.0
  %842 = vmatpush2.msra.mxu0 0.0
  %843 = vmatprep.subr.mxu0 0.0
  %844 = vmatpush2.msra.mxu0 0.0
  %845 = vmatprep.subr.mxu0 0.0
  %846 = vmatpush2.msra.mxu0 0.0
  %847 = vmatprep.subr.mxu0 0.0
  %848 = vmatpush2.msra.mxu0 0.0
  %849 = vmatprep.subr.mxu0 0.0
  %850 = vmatpush2.msra.mxu0 0.0
  %851 = vmatprep.subr.mxu0 0.0
  %852 = vmatpush2.msra.mxu0 0.0
  %853 = vmatprep.mubr.f32.mxu0 0.0
  %854 = vmatmul.mubr.f32.gmra.mxu0 %v787
  %v855 = vpop.f32.mrf.mxu0
  %v856 = vadd.f32 0.0, %v855
  %v857 = vpop.f32.mrf.mxu0
  %858 = vdwg.mxu0
  %v859 = vadd.f32 %v167, %v856
  %v860 = vxor.u32 %v859, 2147483648
  %v861 = vmul.f32 %v860, 1.442695
  %v862 = vpow.pop %v861
  %v863 = vadd.f32 %v862, 1.0
  %v864 = vrcp.pop %v863
  %v865 = vmul.f32 1.0, %v864
  %v866 = vmul.f32 %v865, 2.0
  %v867 = vsub.f32 %v866, 1.0
  %v868 = vmul.f32 %v865, %v777
  %870 = vrot.lane.b32.xlu0 %v867, 64
  %v871 = vpop.permute.xlu0 %870
  %v873 = vmul.f32 %v865, %v871
  %875 = vrot.lane.b32.xlu0 %v873, 32
  %v876 = vpop.permute.xlu0 %875
  %v878 = vadd.f32 %v868, %v876
  %v879 = vtanh.pop %v878
  %881 = vrot.lane.b32.xlu0 %v879, 64
  %v882 = vpop.permute.xlu0 %881
  %v884 = vmul.f32 %v865, %v882
  %886 = vrot.lane.b32.xlu0 %v884, 32
  %v887 = vpop.permute.xlu0 %886
  %v888 = vsel %vm179, %v887, 0
  %890 = vmatprep.subr.mxu0 0.0
  %891 = vmatpush1.msra.mxu0 0.0
  %892 = vmatprep.subr.mxu0 0.0
  %893 = vmatpush1.msra.mxu0 0.0
  %894 = vmatprep.subr.mxu0 0.0
  %895 = vmatpush1.msra.mxu0 0.0
  %896 = vmatprep.subr.mxu0 0.0
  %897 = vmatpush1.msra.mxu0 0.0
  %898 = vmatprep.subr.mxu0 0.0
  %899 = vmatpush1.msra.mxu0 0.0
  %900 = vmatprep.subr.mxu0 0.0
  %901 = vmatpush1.msra.mxu0 0.0
  %902 = vmatprep.subr.mxu0 0.0
  %903 = vmatpush1.msra.mxu0 0.0
  %904 = vmatprep.subr.mxu0 0.0
  %905 = vmatpush1.msra.mxu0 0.0
  %906 = vmatprep.subr.mxu0 0.0
  %907 = vmatpush1.msra.mxu0 0.0
  %908 = vmatprep.subr.mxu0 0.0
  %909 = vmatpush1.msra.mxu0 0.0
  %910 = vmatprep.subr.mxu0 0.0
  %911 = vmatpush1.msra.mxu0 0.0
  %912 = vmatprep.subr.mxu0 0.0
  %913 = vmatpush1.msra.mxu0 0.0
  %914 = vmatprep.subr.mxu0 0.0
  %915 = vmatpush1.msra.mxu0 %v178
  %916 = vmatprep.subr.mxu0 0.0
  %917 = vmatpush1.msra.mxu0 %v177
  %918 = vmatprep.subr.mxu0 0.0
  %919 = vmatpush1.msra.mxu0 %v176
  %920 = vmatprep.subr.mxu0 0.0
  %921 = vmatpush1.msra.mxu0 %v175
  %922 = vmatprep.subr.mxu0 0.0
  %923 = vmatpush2.msra.mxu0 0.0
  %924 = vmatprep.subr.mxu0 0.0
  %925 = vmatpush2.msra.mxu0 0.0
  %926 = vmatprep.subr.mxu0 0.0
  %927 = vmatpush2.msra.mxu0 0.0
  %928 = vmatprep.subr.mxu0 0.0
  %929 = vmatpush2.msra.mxu0 0.0
  %930 = vmatprep.subr.mxu0 0.0
  %931 = vmatpush2.msra.mxu0 0.0
  %932 = vmatprep.subr.mxu0 0.0
  %933 = vmatpush2.msra.mxu0 0.0
  %934 = vmatprep.subr.mxu0 0.0
  %935 = vmatpush2.msra.mxu0 0.0
  %936 = vmatprep.subr.mxu0 0.0
  %937 = vmatpush2.msra.mxu0 0.0
  %938 = vmatprep.subr.mxu0 0.0
  %939 = vmatpush2.msra.mxu0 0.0
  %940 = vmatprep.subr.mxu0 0.0
  %941 = vmatpush2.msra.mxu0 0.0
  %942 = vmatprep.subr.mxu0 0.0
  %943 = vmatpush2.msra.mxu0 0.0
  %944 = vmatprep.subr.mxu0 0.0
  %945 = vmatpush2.msra.mxu0 0.0
  %946 = vmatprep.subr.mxu0 0.0
  %947 = vmatpush2.msra.mxu0 0.0
  %948 = vmatprep.subr.mxu0 0.0
  %949 = vmatpush2.msra.mxu0 0.0
  %950 = vmatprep.subr.mxu0 0.0
  %951 = vmatpush2.msra.mxu0 0.0
  %952 = vmatprep.subr.mxu0 0.0
  %953 = vmatpush2.msra.mxu0 0.0
  %954 = vmatprep.mubr.f32.mxu0 0.0
  %955 = vmatmul.mubr.f32.gmra.mxu0 %v888
  %v956 = vpop.f32.mrf.mxu0
  %v957 = vadd.f32 0.0, %v956
  %v958 = vpop.f32.mrf.mxu0
  %959 = vdwg.mxu0
  %v960 = vadd.f32 %v172, %v957
  %v961 = vxor.u32 %v960, 2147483648
  %v962 = vmul.f32 %v961, 1.442695
  %v963 = vpow.pop %v962
  %v964 = vadd.f32 %v963, 1.0
  %v965 = vrcp.pop %v964
  %v966 = vmul.f32 1.0, %v965
  %v967 = vmul.f32 %v966, 2.0
  %v968 = vsub.f32 %v967, 1.0
  %v969 = vmul.f32 %v966, %v878
  %971 = vrot.lane.b32.xlu0 %v968, 64
  %v972 = vpop.permute.xlu0 %971
  %v974 = vmul.f32 %v966, %v972
  %976 = vrot.lane.b32.xlu0 %v974, 32
  %v977 = vpop.permute.xlu0 %976
  %v979 = vadd.f32 %v969, %v977
  %v980 = vtanh.pop %v979
  %982 = vrot.lane.b32.xlu0 %v980, 64
  %v983 = vpop.permute.xlu0 %982
  %v985 = vmul.f32 %v966, %v983
  %v986 = vld [vmem:[%s4] sm:$0xff]
  %v987 = vld [vmem:[%s4 + $0x8] sm:$0xff]
  %v988 = vld [vmem:[%s4 + $0x10] sm:$0xff]
  %v989 = vld [vmem:[%s4 + $0x18] sm:$0xff]
  %v990 = vld [vmem:[#allocation2] sm:$0x1]
  %v992 = vlaneseq
  %v993 = vshrl.u32 %v992, 7
  %v994 = vsub.s32 0, %v993
  %v995 = vrot.slane %v990, %v994
  %998 = vrot.lane.b32.xlu0 %v985, 32
  %v999 = vpop.permute.xlu0 %998
  %v1000 = vsel %vm179, %v999, 0
  %1002 = vmatprep.subr.mxu0 0.0
  %1003 = vmatpush1.msra.mxu0 0.0
  %1004 = vmatprep.subr.mxu0 0.0
  %1005 = vmatpush1.msra.mxu0 0.0
  %1006 = vmatprep.subr.mxu0 0.0
  %1007 = vmatpush1.msra.mxu0 0.0
  %1008 = vmatprep.subr.mxu0 0.0
  %1009 = vmatpush1.msra.mxu0 0.0
  %1010 = vmatprep.subr.mxu0 0.0
  %1011 = vmatpush1.msra.mxu0 0.0
  %1012 = vmatprep.subr.mxu0 0.0
  %1013 = vmatpush1.msra.mxu0 0.0
  %1014 = vmatprep.subr.mxu0 0.0
  %1015 = vmatpush1.msra.mxu0 0.0
  %1016 = vmatprep.subr.mxu0 0.0
  %1017 = vmatpush1.msra.mxu0 0.0
  %1018 = vmatprep.subr.mxu0 0.0
  %1019 = vmatpush1.msra.mxu0 0.0
  %1020 = vmatprep.subr.mxu0 0.0
  %1021 = vmatpush1.msra.mxu0 0.0
  %1022 = vmatprep.subr.mxu0 0.0
  %1023 = vmatpush1.msra.mxu0 0.0
  %1024 = vmatprep.subr.mxu0 0.0
  %1025 = vmatpush1.msra.mxu0 0.0
  %1026 = vmatprep.subr.mxu0 0.0
  %1027 = vmatpush1.msra.mxu0 %v989
  %1028 = vmatprep.subr.mxu0 0.0
  %1029 = vmatpush1.msra.mxu0 %v988
  %1030 = vmatprep.subr.mxu0 0.0
  %1031 = vmatpush1.msra.mxu0 %v987
  %1032 = vmatprep.subr.mxu0 0.0
  %1033 = vmatpush1.msra.mxu0 %v986
  %1034 = vmatprep.subr.mxu0 0.0
  %1035 = vmatpush2.msra.mxu0 0.0
  %1036 = vmatprep.subr.mxu0 0.0
  %1037 = vmatpush2.msra.mxu0 0.0
  %1038 = vmatprep.subr.mxu0 0.0
  %1039 = vmatpush2.msra.mxu0 0.0
  %1040 = vmatprep.subr.mxu0 0.0
  %1041 = vmatpush2.msra.mxu0 0.0
  %1042 = vmatprep.subr.mxu0 0.0
  %1043 = vmatpush2.msra.mxu0 0.0
  %1044 = vmatprep.subr.mxu0 0.0
  %1045 = vmatpush2.msra.mxu0 0.0
  %1046 = vmatprep.subr.mxu0 0.0
  %1047 = vmatpush2.msra.mxu0 0.0
  %1048 = vmatprep.subr.mxu0 0.0
  %1049 = vmatpush2.msra.mxu0 0.0
  %1050 = vmatprep.subr.mxu0 0.0
  %1051 = vmatpush2.msra.mxu0 0.0
  %1052 = vmatprep.subr.mxu0 0.0
  %1053 = vmatpush2.msra.mxu0 0.0
  %1054 = vmatprep.subr.mxu0 0.0
  %1055 = vmatpush2.msra.mxu0 0.0
  %1056 = vmatprep.subr.mxu0 0.0
  %1057 = vmatpush2.msra.mxu0 0.0
  %1058 = vmatprep.subr.mxu0 0.0
  %1059 = vmatpush2.msra.mxu0 0.0
  %1060 = vmatprep.subr.mxu0 0.0
  %1061 = vmatpush2.msra.mxu0 0.0
  %1062 = vmatprep.subr.mxu0 0.0
  %1063 = vmatpush2.msra.mxu0 0.0
  %1064 = vmatprep.subr.mxu0 0.0
  %1065 = vmatpush2.msra.mxu0 0.0
  %1066 = vmatprep.mubr.f32.mxu0 0.0
  %1067 = vmatmul.mubr.f32.gmra.mxu0 %v1000
  %v1068 = vpop.f32.mrf.mxu0
  %v1069 = vadd.f32 %v995, %v1068
  %v1070 = vpop.f32.mrf.mxu0
  %1071 = vdwg.mxu0
  %vm1072 = vcmask 7168
  %1073 = vst.msk [vmem:[%s6] sm:$0xff] %vm1072, %v1069
  // Predicated region
  $region26: #{tpu_custom_call.1} parent=0 // pred_check
    _
  $region27: #{tpu_custom_call.1} parent=0 // pred_check_branch
    %1075 = sbr.rel (0) target = $region29
  $region28: #{tpu_custom_call.1} parent=0 // pred_region
    _
  $region29: #{tpu_custom_call.1} parent=0 // pred_fallthru
    _
  // Predicated region
  $region30: #{tpu_custom_call.1} parent=0 // pred_check
    _
  $region31: #{tpu_custom_call.1} parent=0 // pred_check_branch
    %1077 = sbr.rel (0) target = $region33
  $region32: #{tpu_custom_call.1} parent=0 // pred_region
    _
  $region33: #{tpu_custom_call.1} parent=0 // pred_fallthru
    _

</llo_original>
